<compile_context>
chip_gen: v7x
topology: tpu7x:2x2x1
jax: 0.10.0
libtpu: 0.0.40
codegen_flags: <defaults>
</compile_context>

<pallas_src>
import functools

import numpy as np
import jax
import jax.numpy as jnp
from jax import lax
from jax.experimental import pallas as pl
from jax.experimental.pallas import tpu as pltpu


# ----------------------------- Pallas kernel -------------------------------
def _op_heads_kernel(q_enc_ref, hs_enc_ref, col_ref, q_len_ref, hs_len_ref,
                     q_attT_ref, q_att_bT_ref, hs_attT_ref, hs_att_bT_ref,
                     big_w_ref, big_b_ref, fin_w_ref, fin_b_ref,
                     out_ref, *, use_hs):
    # q_attT_ref / hs_attT_ref : (H, 2H)  [num-head Wᵀ | op-head Wᵀ] stacked wide
    # q_att_bT_ref / hs_att_bT_ref : (H, 2)  per-head attention biases (columns)
    # big_w_ref : (3H or 5H, 2H) fused [q/(hs)/col -> tanh-input] block matrix
    # fin_w_ref : (2H, 13)       block-diag [num_out(H,2) ; op_out(H,11)]
    col = col_ref[...]                       # (B, H)
    H = col.shape[1]

    def attend(enc_ref, len_ref, attT_ref, att_bT_ref):
        # Batched plain_conditional_weighted_num for BOTH heads of one encoder.
        enc = enc_ref[...]                   # (B, L, H)
        B, L, _ = enc.shape
        lens = len_ref[...]                  # (B, 1) int32
        # col projected through both attention heads at once: one wide matmul.
        colw = jnp.dot(col, attT_ref[...],
                       preferred_element_type=jnp.float32)       # (B, 2H)
        cbias = jnp.dot(col, att_bT_ref[...],
                        preferred_element_type=jnp.float32)      # (B, 2)
        # validity mask over time, built in-kernel from lengths
        t_idx = lax.broadcasted_iota(jnp.int32, (B, L, 1), 1)    # (B, L, 1)
        valid = t_idx < lens[:, :, None]                         # (B, L, 1)
        heads = []
        for a in range(2):                   # static 2-head unroll (num, op)
            cw = colw[:, a * H:(a + 1) * H]                              # (B, H)
            # logits[b,t] = enc[b,t,:]·(Wᵀcol)[b,:] + col·b_a
            logits = jnp.sum(enc * cw[:, None, :], axis=-1,
                             keepdims=True)                              # (B, L, 1)
            logits = logits + cbias[:, a:a + 1][:, :, None]
            logits = jnp.where(valid, logits, jnp.float32(-100.0))
            m = jnp.max(logits, axis=1, keepdims=True)
            e = jnp.exp(logits - m)
            denom = jnp.sum(e, axis=1, keepdims=True)
            p = e * pl.reciprocal(denom, approx=True)                    # softmax
            heads.append(jnp.sum(p * enc, axis=1))                       # (B, H)
        return heads

    q_w_num, q_w = attend(q_enc_ref, q_len_ref, q_attT_ref, q_att_bT_ref)
    if use_hs:
        hs_w_num, hs_w = attend(hs_enc_ref, hs_len_ref,
                                hs_attT_ref, hs_att_bT_ref)
        x_cat = jnp.concatenate([q_w_num, hs_w_num, q_w, hs_w, col],
                                axis=-1)                                 # (B, 5H)
    else:
        # history path statically skipped (use_hs gate already baked in weights)
        x_cat = jnp.concatenate([q_w_num, q_w, col], axis=-1)            # (B, 3H)

    x = jnp.tanh(jnp.dot(x_cat, big_w_ref[...],
                         preferred_element_type=jnp.float32)
                 + big_b_ref[...])                                       # (B, 2H)
    # single fused lane-contiguous store: [:, :2] = op_num_score, [:, 2:] = op_score
    out_ref[...] = (jnp.dot(x, fin_w_ref[...],
                            preferred_element_type=jnp.float32)
                    + fin_b_ref[...])                                    # (B, 13)


# --------------------------- plain-JAX glue ---------------------------------
def _init_linear(key, n_in, n_out):
    kw, kb = jax.random.split(key)
    bound = 1.0 / np.sqrt(n_in)
    w = jax.random.uniform(kw, (n_in, n_out), jnp.float32, -bound, bound)
    b = jax.random.uniform(kb, (n_out,), jnp.float32, -bound, bound)
    return w, b


def _init_lstm(key, input_size, hidden_size, num_layers):
    layers = []
    for l in range(num_layers):
        in_size = input_size if l == 0 else 2 * hidden_size
        dirs = []
        for _ in range(2):  # forward / backward
            key, k1, k2, k3, k4 = jax.random.split(key, 5)
            bound = 1.0 / np.sqrt(hidden_size)
            w_ih = jax.random.uniform(k1, (4 * hidden_size, in_size),
                                      jnp.float32, -bound, bound)
            w_hh = jax.random.uniform(k2, (4 * hidden_size, hidden_size),
                                      jnp.float32, -bound, bound)
            b_ih = jax.random.uniform(k3, (4 * hidden_size,), jnp.float32,
                                      -bound, bound)
            b_hh = jax.random.uniform(k4, (4 * hidden_size,), jnp.float32,
                                      -bound, bound)
            dirs.append((w_ih, w_hh, b_ih, b_hh))
        layers.append(tuple(dirs))
    return layers


def _reverse_by_length(x, lengths):
    # y[b, t] = x[b, lengths[b]-1-t] for t < lengths[b], else 0 (packed-seq reverse)
    L = x.shape[1]
    t = jnp.arange(L)
    idx = lengths[:, None] - 1 - t[None, :]
    valid = (idx >= 0)
    idx = jnp.clip(idx, 0, L - 1)
    g = jnp.take_along_axis(x, idx[:, :, None], axis=1)
    return g * valid[:, :, None].astype(x.dtype)


def _bilstm_layer(dir_params, x, lengths):
    # One bidirectional LSTM layer with the fw/bw directions fused into a
    # single batched scan and the input projection hoisted out of the scan.
    (wif, whf, bif, bhf), (wib, whb, bib, bhb) = dir_params
    B, L, _ = x.shape
    H = whf.shape[1]
    x_rev = _reverse_by_length(x, lengths)
    x2 = jnp.stack([x, x_rev], axis=0)                       # (2, B, L, D)
    w_ih = jnp.stack([wif, wib], axis=0)                     # (2, 4H, D)
    w_hh = jnp.stack([whf, whb], axis=0)                     # (2, 4H, H)
    bias = jnp.stack([bif + bhf, bib + bhb], axis=0)         # (2, 4H)

    # Hoisted input projection: one big matmul per layer (not per timestep).
    xp = jnp.einsum('dbli,dgi->dblg', x2, w_ih) + bias[:, None, None, :]

    def step(carry, xp_t):                                   # xp_t (2, B, 4H)
        h, c = carry
        gates = xp_t + jnp.einsum('dbh,dgh->dbg', h, w_hh)
        i, f, g, o = jnp.split(gates, 4, axis=-1)
        i = jax.nn.sigmoid(i)
        f = jax.nn.sigmoid(f)
        g = jnp.tanh(g)
        o = jax.nn.sigmoid(o)
        c = f * c + i * g
        h = o * jnp.tanh(c)
        return (h, c), h

    h0 = jnp.zeros((2, B, H), x.dtype)
    c0 = jnp.zeros((2, B, H), x.dtype)
    _, hs = lax.scan(step, (h0, c0), jnp.moveaxis(xp, 2, 0))  # (L, 2, B, H)
    hs = jnp.moveaxis(hs, 0, 2)                               # (2, B, L, H)
    out_f = hs[0]
    out_b = _reverse_by_length(hs[1], lengths)
    return jnp.concatenate([out_f, out_b], axis=-1)           # (B, L, 2H)


def run_bilstm(lstm_params, x, lengths):
    # emulates run_lstm() (packed, bidirectional, batch_first).
    # TODO(synk): inter-layer dropout (p=0.3) is train-only and is omitted here.
    B, L, _ = x.shape
    mask = (jnp.arange(L)[None, :] < lengths[:, None]).astype(x.dtype)
    out = x
    for layer in lstm_params:
        out = _bilstm_layer(layer, out, lengths) * mask[:, :, None]
    return out


def encode_gt_cols(col_lstm_params, col_emb_var, col_name_len, col_len, gt_col):
    # col_tab_name_encode + selection col_enc[b, gt_col[b]]
    name_hidden = run_bilstm(col_lstm_params, col_emb_var, col_name_len)
    total = col_emb_var.shape[0]
    name_out = name_hidden[jnp.arange(total), col_name_len - 1]     # (total, N_h)
    offsets = np.concatenate([[0], np.cumsum(np.asarray(col_len))[:-1]])
    idx = jnp.asarray(offsets + np.asarray(gt_col), dtype=jnp.int32)
    return name_out[idx]                                            # (B, N_h)


class OpPredictorPallas:
    def __init__(self, N_word, N_h, N_depth, use_hs=True, seed=0):
        self.N_h = N_h
        self.use_hs = use_hs
        H = N_h
        key = jax.random.PRNGKey(seed)
        ks = jax.random.split(key, 16)

        self.q_lstm = _init_lstm(ks[0], N_word, N_h // 2, N_depth)
        self.hs_lstm = _init_lstm(ks[1], N_word, N_h // 2, N_depth)
        self.col_lstm = _init_lstm(ks[2], N_word, N_h // 2, N_depth)

        # attention heads, stacked wide: columns = [num-head | op-head]
        q_num_w, q_num_b = _init_linear(ks[3], H, H)    # q_num_att
        hs_num_w, hs_num_b = _init_linear(ks[4], H, H)  # hs_num_att
        q_att_w, q_att_b = _init_linear(ks[5], H, H)    # q_att
        hs_att_w, hs_att_b = _init_linear(ks[6], H, H)  # hs_att
        # colW = col @ Wᵀ  (weights stored (in, out), so transpose here once)
        self.q_attT = jnp.concatenate([q_num_w.T, q_att_w.T], axis=1)    # (H, 2H)
        self.q_att_bT = jnp.stack([q_num_b, q_att_b], axis=1)            # (H, 2)
        self.hs_attT = jnp.concatenate([hs_num_w.T, hs_att_w.T], axis=1)
        self.hs_att_bT = jnp.stack([hs_num_b, hs_att_b], axis=1)

        # six projection linears fused into one block matrix (use_hs baked in)
        nq_w, nq_b = _init_linear(ks[7], H, H)      # op_num_out_q
        nh_w, nh_b = _init_linear(ks[8], H, H)      # op_num_out_hs
        nc_w, nc_b = _init_linear(ks[9], H, H)      # op_num_out_c
        oq_w, oq_b = _init_linear(ks[10], H, H)     # op_out_q
        oh_w, oh_b = _init_linear(ks[11], H, H)     # op_out_hs
        oc_w, oc_b = _init_linear(ks[12], H, H)     # op_out_c
        zhh = jnp.zeros((H, H), jnp.float32)
        if use_hs:
            # x_cat = [q_w_num, hs_w_num, q_w, hs_w, col]  -> (B, 5H)
            self.big_w = jnp.concatenate([
                jnp.concatenate([nq_w, zhh], axis=1),
                jnp.concatenate([nh_w, zhh], axis=1),
                jnp.concatenate([zhh, oq_w], axis=1),
                jnp.concatenate([zhh, oh_w], axis=1),
                jnp.concatenate([nc_w, oc_w], axis=1)], axis=0)          # (5H, 2H)
            big_b_num = nq_b + nh_b + nc_b
            big_b_op = oq_b + oh_b + oc_b
        else:
            # x_cat = [q_w_num, q_w, col]  -> (B, 3H); hs path statically dropped
            self.big_w = jnp.concatenate([
                jnp.concatenate([nq_w, zhh], axis=1),
                jnp.concatenate([zhh, oq_w], axis=1),
                jnp.concatenate([nc_w, oc_w], axis=1)], axis=0)          # (3H, 2H)
            big_b_num = nq_b + nc_b
            big_b_op = oq_b + oc_b
        self.big_b = jnp.concatenate([big_b_num, big_b_op]).reshape(1, 2 * H)

        # final heads fused into one block-diagonal (2H, 13) matrix
        nf_w, nf_b = _init_linear(ks[13], H, 2)     # op_num_out[1]
        of_w, of_b = _init_linear(ks[14], H, 11)    # op_out[1]
        self.fin_w = jnp.concatenate([
            jnp.concatenate([nf_w, jnp.zeros((H, 11), jnp.float32)], axis=1),
            jnp.concatenate([jnp.zeros((H, 2), jnp.float32), of_w], axis=1)],
            axis=0)                                                      # (2H, 13)
        self.fin_b = jnp.concatenate([nf_b, of_b]).reshape(1, 13)

    def forward(self, q_emb_var, q_len, hs_emb_var, hs_len,
                col_emb_var, col_len, col_name_len, gt_col):
        q_len_j = jnp.asarray(q_len, jnp.int32)
        hs_len_j = jnp.asarray(hs_len, jnp.int32)
        name_len_j = jnp.asarray(col_name_len, jnp.int32)

        q_enc = run_bilstm(self.q_lstm, q_emb_var, q_len_j)        # (B, Lq, H)
        hs_enc = run_bilstm(self.hs_lstm, hs_emb_var, hs_len_j)    # (B, Lhs, H)
        col_emb = encode_gt_cols(self.col_lstm, col_emb_var,
                                 name_len_j, col_len, gt_col)      # (B, H)

        B = q_enc.shape[0]
        q_len_k = q_len_j.reshape(B, 1)                            # (B, 1) int32
        hs_len_k = hs_len_j.reshape(B, 1)

        kernel = functools.partial(_op_heads_kernel, use_hs=self.use_hs)
        vmem = lambda: pl.BlockSpec(memory_space=pltpu.MemorySpace.VMEM)
        out = pl.pallas_call(
            kernel,
            out_shape=jax.ShapeDtypeStruct((B, 13), jnp.float32),
            in_specs=[vmem() for _ in range(13)],
            out_specs=vmem(),
        )(q_enc, hs_enc, col_emb, q_len_k, hs_len_k,
          self.q_attT, self.q_att_bT, self.hs_attT, self.hs_att_bT,
          self.big_w, self.big_b, self.fin_w, self.fin_b)
        op_num_score = out[:, :2]
        op_score = out[:, 2:]
        return op_num_score, op_score


if __name__ == "__main__":
    N_word, N_h, N_depth = 16, 32, 2
    B = 2
    q_len = [8, 6]
    hs_len = [5, 4]
    col_len = [3, 4]                  # columns per schema (per batch element)
    col_name_len = [2, 3, 1, 4, 2, 2, 3]
    gt_col = [1, 2]
    total_cols = sum(col_len)
    max_q, max_hs, max_name = max(q_len), max(hs_len), max(col_name_len)

    key = jax.random.PRNGKey(0)
    k1, k2, k3 = jax.random.split(key, 3)
    q_emb_var = jax.random.normal(k1, (B, max_q, N_word), jnp.float32)
    hs_emb_var = jax.random.normal(k2, (B, max_hs, N_word), jnp.float32)
    col_emb_var = jax.random.normal(k3, (total_cols, max_name, N_word), jnp.float32)

    model = OpPredictorPallas(N_word, N_h, N_depth, use_hs=True, seed=0)
    op_num_score, op_score = model.forward(q_emb_var, q_len, hs_emb_var, hs_len,
                                           col_emb_var, col_len, col_name_len,
                                           gt_col)
    jax.block_until_ready((op_num_score, op_score))
    assert op_num_score.shape == (B, 2), op_num_score.shape
    assert op_score.shape == (B, 11), op_score.shape
    assert bool(jnp.all(jnp.isfinite(op_num_score))) and bool(jnp.all(jnp.isfinite(op_score)))
    print("KERNEL_OK")
</pallas_src>

<mosaic_0001>
module attributes {stable_mosaic.version = 11 : i64} {
  func.func @_op_heads_kernel(%arg0: memref<2x8x32xf32, #tpu.memory_space<vmem>>, %arg1: memref<2x5x32xf32, #tpu.memory_space<vmem>>, %arg2: memref<2x32xf32, #tpu.memory_space<vmem>>, %arg3: memref<2x1xi32, #tpu.memory_space<vmem>>, %arg4: memref<2x1xi32, #tpu.memory_space<vmem>>, %arg5: memref<32x64xf32, #tpu.memory_space<vmem>>, %arg6: memref<32x2xf32, #tpu.memory_space<vmem>>, %arg7: memref<32x64xf32, #tpu.memory_space<vmem>>, %arg8: memref<32x2xf32, #tpu.memory_space<vmem>>, %arg9: memref<160x64xf32, #tpu.memory_space<vmem>>, %arg10: memref<1x64xf32, #tpu.memory_space<vmem>>, %arg11: memref<64x13xf32, #tpu.memory_space<vmem>>, %arg12: memref<1x13xf32, #tpu.memory_space<vmem>>, %arg13: memref<2x13xf32, #tpu.memory_space<vmem>>) attributes {dimension_semantics = [], scalar_prefetch = 0 : i64, scratch_operands = 0 : i64, tpu.core_type = #tpu.core_type<tc>} {
    %c0 = arith.constant 0 : index
    %c0_0 = arith.constant 0 : index
    %0 = vector.load %arg2[%c0, %c0_0] : memref<2x32xf32, #tpu.memory_space<vmem>>, vector<2x32xf32>
    %c0_1 = arith.constant 0 : index
    %c0_2 = arith.constant 0 : index
    %c0_3 = arith.constant 0 : index
    %1 = vector.load %arg0[%c0_1, %c0_2, %c0_3] : memref<2x8x32xf32, #tpu.memory_space<vmem>>, vector<2x8x32xf32>
    %c0_4 = arith.constant 0 : index
    %c0_5 = arith.constant 0 : index
    %2 = vector.load %arg3[%c0_4, %c0_5] : memref<2x1xi32, #tpu.memory_space<vmem>>, vector<2x1xi32>
    %c0_6 = arith.constant 0 : index
    %c0_7 = arith.constant 0 : index
    %3 = vector.load %arg5[%c0_6, %c0_7] : memref<32x64xf32, #tpu.memory_space<vmem>>, vector<32x64xf32>
    %cst = arith.constant dense<0.000000e+00> : vector<2x64xf32>
    %4 = tpu.matmul %0, %3, %cst {dimension_numbers = #tpu.dot_dimension_numbers<[1], [0], [0], [1], [0, 0, 1, 1], [], []>} : vector<2x32xf32>, vector<32x64xf32>, vector<2x64xf32> -> vector<2x64xf32>
    %c0_8 = arith.constant 0 : index
    %c0_9 = arith.constant 0 : index
    %5 = vector.load %arg6[%c0_8, %c0_9] : memref<32x2xf32, #tpu.memory_space<vmem>>, vector<32x2xf32>
    %cst_10 = arith.constant dense<0.000000e+00> : vector<2x2xf32>
    %6 = tpu.matmul %0, %5, %cst_10 {dimension_numbers = #tpu.dot_dimension_numbers<[1], [0], [0], [1], [0, 0, 1, 1], [], []>} : vector<2x32xf32>, vector<32x2xf32>, vector<2x2xf32> -> vector<2x2xf32>
    %7 = tpu.iota {dimensions = array<i32: 1>} : vector<2x8x1xi32>
    %8 = vector.shape_cast %2 : vector<2x1xi32> to vector<2x1x1xi32>
    %9 = vector.broadcast %8 : vector<2x1x1xi32> to vector<2x8x1xi32>
    %10 = arith.cmpi slt, %7, %9 : vector<2x8x1xi32>
    %11 = vector.extract_strided_slice %4 {offsets = [0, 0], sizes = [2, 32], strides = [1, 1]} : vector<2x64xf32> to vector<2x32xf32>
    %12 = vector.shape_cast %11 : vector<2x32xf32> to vector<2x1x32xf32>
    %13 = vector.broadcast %12 : vector<2x1x32xf32> to vector<2x8x32xf32>
    %14 = arith.mulf %1, %13 : vector<2x8x32xf32>
    %cst_11 = arith.constant dense<0.000000e+00> : vector<2x8xf32>
    %15 = vector.multi_reduction <add>, %14, %cst_11 [2] : vector<2x8x32xf32> to vector<2x8xf32>
    %16 = vector.shape_cast %15 : vector<2x8xf32> to vector<2x8x1xf32>
    %17 = vector.extract_strided_slice %6 {offsets = [0, 0], sizes = [2, 1], strides = [1, 1]} : vector<2x2xf32> to vector<2x1xf32>
    %18 = vector.shape_cast %17 : vector<2x1xf32> to vector<2x1x1xf32>
    %19 = vector.broadcast %18 : vector<2x1x1xf32> to vector<2x8x1xf32>
    %20 = arith.addf %16, %19 : vector<2x8x1xf32>
    %cst_12 = arith.constant -1.000000e+02 : f32
    %21 = vector.broadcast %cst_12 : f32 to vector<2x8x1xf32>
    %22 = arith.select %10, %20, %21 : vector<2x8x1xi1>, vector<2x8x1xf32>
    %cst_13 = arith.constant dense<0xFF800000> : vector<2x1xf32>
    %23 = vector.multi_reduction <maximumf>, %22, %cst_13 [1] : vector<2x8x1xf32> to vector<2x1xf32>
    %24 = vector.shape_cast %23 : vector<2x1xf32> to vector<2x1x1xf32>
    %25 = vector.broadcast %24 : vector<2x1x1xf32> to vector<2x8x1xf32>
    %26 = arith.subf %22, %25 : vector<2x8x1xf32>
    %27 = math.exp %26 : vector<2x8x1xf32>
    %cst_14 = arith.constant dense<0.000000e+00> : vector<2x1xf32>
    %28 = vector.multi_reduction <add>, %27, %cst_14 [1] : vector<2x8x1xf32> to vector<2x1xf32>
    %29 = vector.shape_cast %28 : vector<2x1xf32> to vector<2x1x1xf32>
    %30 = tpu.reciprocal %29 {approx = true} : vector<2x1x1xf32> -> vector<2x1x1xf32>
    %31 = vector.broadcast %30 : vector<2x1x1xf32> to vector<2x8x1xf32>
    %32 = arith.mulf %27, %31 : vector<2x8x1xf32>
    %33 = vector.broadcast %32 : vector<2x8x1xf32> to vector<2x8x32xf32>
    %34 = arith.mulf %33, %1 : vector<2x8x32xf32>
    %cst_15 = arith.constant dense<0.000000e+00> : vector<2x32xf32>
    %35 = vector.multi_reduction <add>, %34, %cst_15 [1] : vector<2x8x32xf32> to vector<2x32xf32>
    %36 = vector.extract_strided_slice %4 {offsets = [0, 32], sizes = [2, 32], strides = [1, 1]} : vector<2x64xf32> to vector<2x32xf32>
    %37 = vector.shape_cast %36 : vector<2x32xf32> to vector<2x1x32xf32>
    %38 = vector.broadcast %37 : vector<2x1x32xf32> to vector<2x8x32xf32>
    %39 = arith.mulf %1, %38 : vector<2x8x32xf32>
    %cst_16 = arith.constant dense<0.000000e+00> : vector<2x8xf32>
    %40 = vector.multi_reduction <add>, %39, %cst_16 [2] : vector<2x8x32xf32> to vector<2x8xf32>
    %41 = vector.shape_cast %40 : vector<2x8xf32> to vector<2x8x1xf32>
    %42 = vector.extract_strided_slice %6 {offsets = [0, 1], sizes = [2, 1], strides = [1, 1]} : vector<2x2xf32> to vector<2x1xf32>
    %43 = vector.shape_cast %42 : vector<2x1xf32> to vector<2x1x1xf32>
    %44 = vector.broadcast %43 : vector<2x1x1xf32> to vector<2x8x1xf32>
    %45 = arith.addf %41, %44 : vector<2x8x1xf32>
    %cst_17 = arith.constant -1.000000e+02 : f32
    %46 = vector.broadcast %cst_17 : f32 to vector<2x8x1xf32>
    %47 = arith.select %10, %45, %46 : vector<2x8x1xi1>, vector<2x8x1xf32>
    %cst_18 = arith.constant dense<0xFF800000> : vector<2x1xf32>
    %48 = vector.multi_reduction <maximumf>, %47, %cst_18 [1] : vector<2x8x1xf32> to vector<2x1xf32>
    %49 = vector.shape_cast %48 : vector<2x1xf32> to vector<2x1x1xf32>
    %50 = vector.broadcast %49 : vector<2x1x1xf32> to vector<2x8x1xf32>
    %51 = arith.subf %47, %50 : vector<2x8x1xf32>
    %52 = math.exp %51 : vector<2x8x1xf32>
    %cst_19 = arith.constant dense<0.000000e+00> : vector<2x1xf32>
    %53 = vector.multi_reduction <add>, %52, %cst_19 [1] : vector<2x8x1xf32> to vector<2x1xf32>
    %54 = vector.shape_cast %53 : vector<2x1xf32> to vector<2x1x1xf32>
    %55 = tpu.reciprocal %54 {approx = true} : vector<2x1x1xf32> -> vector<2x1x1xf32>
    %56 = vector.broadcast %55 : vector<2x1x1xf32> to vector<2x8x1xf32>
    %57 = arith.mulf %52, %56 : vector<2x8x1xf32>
    %58 = vector.broadcast %57 : vector<2x8x1xf32> to vector<2x8x32xf32>
    %59 = arith.mulf %58, %1 : vector<2x8x32xf32>
    %cst_20 = arith.constant dense<0.000000e+00> : vector<2x32xf32>
    %60 = vector.multi_reduction <add>, %59, %cst_20 [1] : vector<2x8x32xf32> to vector<2x32xf32>
    %c0_21 = arith.constant 0 : index
    %c0_22 = arith.constant 0 : index
    %c0_23 = arith.constant 0 : index
    %61 = vector.load %arg1[%c0_21, %c0_22, %c0_23] : memref<2x5x32xf32, #tpu.memory_space<vmem>>, vector<2x5x32xf32>
    %c0_24 = arith.constant 0 : index
    %c0_25 = arith.constant 0 : index
    %62 = vector.load %arg4[%c0_24, %c0_25] : memref<2x1xi32, #tpu.memory_space<vmem>>, vector<2x1xi32>
    %c0_26 = arith.constant 0 : index
    %c0_27 = arith.constant 0 : index
    %63 = vector.load %arg7[%c0_26, %c0_27] : memref<32x64xf32, #tpu.memory_space<vmem>>, vector<32x64xf32>
    %cst_28 = arith.constant dense<0.000000e+00> : vector<2x64xf32>
    %64 = tpu.matmul %0, %63, %cst_28 {dimension_numbers = #tpu.dot_dimension_numbers<[1], [0], [0], [1], [0, 0, 1, 1], [], []>} : vector<2x32xf32>, vector<32x64xf32>, vector<2x64xf32> -> vector<2x64xf32>
    %c0_29 = arith.constant 0 : index
    %c0_30 = arith.constant 0 : index
    %65 = vector.load %arg8[%c0_29, %c0_30] : memref<32x2xf32, #tpu.memory_space<vmem>>, vector<32x2xf32>
    %cst_31 = arith.constant dense<0.000000e+00> : vector<2x2xf32>
    %66 = tpu.matmul %0, %65, %cst_31 {dimension_numbers = #tpu.dot_dimension_numbers<[1], [0], [0], [1], [0, 0, 1, 1], [], []>} : vector<2x32xf32>, vector<32x2xf32>, vector<2x2xf32> -> vector<2x2xf32>
    %67 = tpu.iota {dimensions = array<i32: 1>} : vector<2x5x1xi32>
    %68 = vector.shape_cast %62 : vector<2x1xi32> to vector<2x1x1xi32>
    %69 = vector.broadcast %68 : vector<2x1x1xi32> to vector<2x5x1xi32>
    %70 = arith.cmpi slt, %67, %69 : vector<2x5x1xi32>
    %71 = vector.extract_strided_slice %64 {offsets = [0, 0], sizes = [2, 32], strides = [1, 1]} : vector<2x64xf32> to vector<2x32xf32>
    %72 = vector.shape_cast %71 : vector<2x32xf32> to vector<2x1x32xf32>
    %73 = vector.broadcast %72 : vector<2x1x32xf32> to vector<2x5x32xf32>
    %74 = arith.mulf %61, %73 : vector<2x5x32xf32>
    %cst_32 = arith.constant dense<0.000000e+00> : vector<2x5xf32>
    %75 = vector.multi_reduction <add>, %74, %cst_32 [2] : vector<2x5x32xf32> to vector<2x5xf32>
    %76 = vector.shape_cast %75 : vector<2x5xf32> to vector<2x5x1xf32>
    %77 = vector.extract_strided_slice %66 {offsets = [0, 0], sizes = [2, 1], strides = [1, 1]} : vector<2x2xf32> to vector<2x1xf32>
    %78 = vector.shape_cast %77 : vector<2x1xf32> to vector<2x1x1xf32>
    %79 = vector.broadcast %78 : vector<2x1x1xf32> to vector<2x5x1xf32>
    %80 = arith.addf %76, %79 : vector<2x5x1xf32>
    %cst_33 = arith.constant -1.000000e+02 : f32
    %81 = vector.broadcast %cst_33 : f32 to vector<2x5x1xf32>
    %82 = arith.select %70, %80, %81 : vector<2x5x1xi1>, vector<2x5x1xf32>
    %cst_34 = arith.constant dense<0xFF800000> : vector<2x1xf32>
    %83 = vector.multi_reduction <maximumf>, %82, %cst_34 [1] : vector<2x5x1xf32> to vector<2x1xf32>
    %84 = vector.shape_cast %83 : vector<2x1xf32> to vector<2x1x1xf32>
    %85 = vector.broadcast %84 : vector<2x1x1xf32> to vector<2x5x1xf32>
    %86 = arith.subf %82, %85 : vector<2x5x1xf32>
    %87 = math.exp %86 : vector<2x5x1xf32>
    %cst_35 = arith.constant dense<0.000000e+00> : vector<2x1xf32>
    %88 = vector.multi_reduction <add>, %87, %cst_35 [1] : vector<2x5x1xf32> to vector<2x1xf32>
    %89 = vector.shape_cast %88 : vector<2x1xf32> to vector<2x1x1xf32>
    %90 = tpu.reciprocal %89 {approx = true} : vector<2x1x1xf32> -> vector<2x1x1xf32>
    %91 = vector.broadcast %90 : vector<2x1x1xf32> to vector<2x5x1xf32>
    %92 = arith.mulf %87, %91 : vector<2x5x1xf32>
    %93 = vector.broadcast %92 : vector<2x5x1xf32> to vector<2x5x32xf32>
    %94 = arith.mulf %93, %61 : vector<2x5x32xf32>
    %cst_36 = arith.constant dense<0.000000e+00> : vector<2x32xf32>
    %95 = vector.multi_reduction <add>, %94, %cst_36 [1] : vector<2x5x32xf32> to vector<2x32xf32>
    %96 = vector.extract_strided_slice %64 {offsets = [0, 32], sizes = [2, 32], strides = [1, 1]} : vector<2x64xf32> to vector<2x32xf32>
    %97 = vector.shape_cast %96 : vector<2x32xf32> to vector<2x1x32xf32>
    %98 = vector.broadcast %97 : vector<2x1x32xf32> to vector<2x5x32xf32>
    %99 = arith.mulf %61, %98 : vector<2x5x32xf32>
    %cst_37 = arith.constant dense<0.000000e+00> : vector<2x5xf32>
    %100 = vector.multi_reduction <add>, %99, %cst_37 [2] : vector<2x5x32xf32> to vector<2x5xf32>
    %101 = vector.shape_cast %100 : vector<2x5xf32> to vector<2x5x1xf32>
    %102 = vector.extract_strided_slice %66 {offsets = [0, 1], sizes = [2, 1], strides = [1, 1]} : vector<2x2xf32> to vector<2x1xf32>
    %103 = vector.shape_cast %102 : vector<2x1xf32> to vector<2x1x1xf32>
    %104 = vector.broadcast %103 : vector<2x1x1xf32> to vector<2x5x1xf32>
    %105 = arith.addf %101, %104 : vector<2x5x1xf32>
    %cst_38 = arith.constant -1.000000e+02 : f32
    %106 = vector.broadcast %cst_38 : f32 to vector<2x5x1xf32>
    %107 = arith.select %70, %105, %106 : vector<2x5x1xi1>, vector<2x5x1xf32>
    %cst_39 = arith.constant dense<0xFF800000> : vector<2x1xf32>
    %108 = vector.multi_reduction <maximumf>, %107, %cst_39 [1] : vector<2x5x1xf32> to vector<2x1xf32>
    %109 = vector.shape_cast %108 : vector<2x1xf32> to vector<2x1x1xf32>
    %110 = vector.broadcast %109 : vector<2x1x1xf32> to vector<2x5x1xf32>
    %111 = arith.subf %107, %110 : vector<2x5x1xf32>
    %112 = math.exp %111 : vector<2x5x1xf32>
    %cst_40 = arith.constant dense<0.000000e+00> : vector<2x1xf32>
    %113 = vector.multi_reduction <add>, %112, %cst_40 [1] : vector<2x5x1xf32> to vector<2x1xf32>
    %114 = vector.shape_cast %113 : vector<2x1xf32> to vector<2x1x1xf32>
    %115 = tpu.reciprocal %114 {approx = true} : vector<2x1x1xf32> -> vector<2x1x1xf32>
    %116 = vector.broadcast %115 : vector<2x1x1xf32> to vector<2x5x1xf32>
    %117 = arith.mulf %112, %116 : vector<2x5x1xf32>
    %118 = vector.broadcast %117 : vector<2x5x1xf32> to vector<2x5x32xf32>
    %119 = arith.mulf %118, %61 : vector<2x5x32xf32>
    %cst_41 = arith.constant dense<0.000000e+00> : vector<2x32xf32>
    %120 = vector.multi_reduction <add>, %119, %cst_41 [1] : vector<2x5x32xf32> to vector<2x32xf32>
    %121 = tpu.concatenate %35, %95, %60, %120, %0 in 1 : vector<2x32xf32>, vector<2x32xf32>, vector<2x32xf32>, vector<2x32xf32>, vector<2x32xf32> -> vector<2x160xf32>
    %c0_42 = arith.constant 0 : index
    %c0_43 = arith.constant 0 : index
    %122 = vector.load %arg9[%c0_42, %c0_43] : memref<160x64xf32, #tpu.memory_space<vmem>>, vector<160x64xf32>
    %cst_44 = arith.constant dense<0.000000e+00> : vector<2x64xf32>
    %123 = tpu.matmul %121, %122, %cst_44 {dimension_numbers = #tpu.dot_dimension_numbers<[1], [0], [0], [1], [0, 0, 1, 1], [], []>} : vector<2x160xf32>, vector<160x64xf32>, vector<2x64xf32> -> vector<2x64xf32>
    %c0_45 = arith.constant 0 : index
    %c0_46 = arith.constant 0 : index
    %124 = vector.load %arg10[%c0_45, %c0_46] : memref<1x64xf32, #tpu.memory_space<vmem>>, vector<1x64xf32>
    %125 = vector.broadcast %124 : vector<1x64xf32> to vector<2x64xf32>
    %126 = arith.addf %123, %125 : vector<2x64xf32>
    %127 = math.tanh %126 : vector<2x64xf32>
    %c0_47 = arith.constant 0 : index
    %c0_48 = arith.constant 0 : index
    %128 = vector.load %arg11[%c0_47, %c0_48] : memref<64x13xf32, #tpu.memory_space<vmem>>, vector<64x13xf32>
    %cst_49 = arith.constant dense<0.000000e+00> : vector<2x13xf32>
    %129 = tpu.matmul %127, %128, %cst_49 {dimension_numbers = #tpu.dot_dimension_numbers<[1], [0], [0], [1], [0, 0, 1, 1], [], []>} : vector<2x64xf32>, vector<64x13xf32>, vector<2x13xf32> -> vector<2x13xf32>
    %c0_50 = arith.constant 0 : index
    %c0_51 = arith.constant 0 : index
    %130 = vector.load %arg12[%c0_50, %c0_51] : memref<1x13xf32, #tpu.memory_space<vmem>>, vector<1x13xf32>
    %131 = vector.broadcast %130 : vector<1x13xf32> to vector<2x13xf32>
    %132 = arith.addf %129, %131 : vector<2x13xf32>
    %c0_52 = arith.constant 0 : index
    %c0_53 = arith.constant 0 : index
    %133 = vector.load %arg13[%c0_52, %c0_53] : memref<2x13xf32, #tpu.memory_space<vmem>>, vector<2x13xf32>
    tpu.vector_store %arg13[%c0_52, %c0_53], %132 {strides = array<i32>} : memref<2x13xf32, #tpu.memory_space<vmem>>, vector<2x13xf32>,
    return
  }
}

</mosaic_0001>

<llo_original>
// kernel: tpu_custom_call.1
$region0: #{tpu_custom_call.1}
  #allocation0 [shape = 'u32[]', space=smem, size = 0x4, offset = 0x4, fixed_abs, tag = 'smem constant byte address 0x4 - core index']
  #allocation1 [shape = 'u32[144,128]{1,0:T(1,128)}', space=vmem, size = 0x12000, scoped, tag = 'internal scratch']
  %s0 = inlined_call_operand.vmem [shape: f32[2,8,32], index: 0, kind: input, shape index: {}]
  %s1 = inlined_call_operand.vmem [shape: f32[2,5,32], index: 1, kind: input, shape index: {}]
  %s2 = inlined_call_operand.vmem [shape: f32[2,32], index: 2, kind: input, shape index: {}]
  %s3 = inlined_call_operand.vmem [shape: s32[2,1], index: 3, kind: input, shape index: {}]
  %s4 = inlined_call_operand.vmem [shape: s32[2,1], index: 4, kind: input, shape index: {}]
  %s5 = inlined_call_operand.vmem [shape: f32[32,64], index: 5, kind: input, shape index: {}]
  %s6 = inlined_call_operand.vmem [shape: f32[32,2], index: 6, kind: input, shape index: {}]
  %s7 = inlined_call_operand.vmem [shape: f32[32,64], index: 7, kind: input, shape index: {}]
  %s8 = inlined_call_operand.vmem [shape: f32[32,2], index: 8, kind: input, shape index: {}]
  %s9 = inlined_call_operand.vmem [shape: f32[160,64], index: 9, kind: input, shape index: {}]
  %s10 = inlined_call_operand.vmem [shape: f32[1,64], index: 10, kind: input, shape index: {}]
  %s11 = inlined_call_operand.vmem [shape: f32[64,13], index: 11, kind: input, shape index: {}]
  %s12 = inlined_call_operand.vmem [shape: f32[1,13], index: 12, kind: input, shape index: {}]
  %s13 = inlined_call_operand.hbm [shape: f32[2,13], index: 13, kind: output, shape index: {}]
  %s14 = sld [smem:[#allocation0]]
  $region62: #{tpu_custom_call.1} parent=0
    _
  %s16 = ssub.s32 1, %s14
  %s17 = scalar_select 0, %s16, %s14
  $region1: #{tpu_custom_call.1} parent=0
    #allocation2 [shape = 'u8[1024]{0}', space=vmem, size = 0x400, scoped, tag = 'output window, operand 0, single buffered']
    #allocation3 [shape = 's32[1]{0}', space=sflag, size = 0x4, scoped, tag = 'scoped memory for tpu_custom_call.1']
    %18 = vsyncpa [#allocation3], 0
    // Predicated region
    $region2: #{tpu_custom_call.1} parent=1 // pred_check
      _
    $region3: #{tpu_custom_call.1} parent=1 // pred_check_branch
      %20 = sbr.rel (0) target = $region5
    $region4: #{tpu_custom_call.1} parent=1 // pred_region
      _
    $region5: #{tpu_custom_call.1} parent=1 // pred_fallthru
      _
    // Predicated region
    $region6: #{tpu_custom_call.1} parent=1 // pred_check
      _
    $region7: #{tpu_custom_call.1} parent=1 // pred_check_branch
      %22 = sbr.rel (0) target = $region9
    $region8: #{tpu_custom_call.1} parent=1 // pred_region
      _
    $region9: #{tpu_custom_call.1} parent=1 // pred_fallthru
      _
    // Predicated region
    $region10: #{tpu_custom_call.1} parent=1 // pred_check
      _
    $region11: #{tpu_custom_call.1} parent=1 // pred_check_branch
      %24 = sbr.rel (0) target = $region13
    $region12: #{tpu_custom_call.1} parent=1 // pred_region
      _
    $region13: #{tpu_custom_call.1} parent=1 // pred_fallthru
      _
    // Predicated region
    $region14: #{tpu_custom_call.1} parent=1 // pred_check
      _
    $region15: #{tpu_custom_call.1} parent=1 // pred_check_branch
      %26 = sbr.rel (0) target = $region17
    $region16: #{tpu_custom_call.1} parent=1 // pred_region
      _
    $region17: #{tpu_custom_call.1} parent=1 // pred_fallthru
      _
    // Predicated region
    $region18: #{tpu_custom_call.1} parent=1 // pred_check
      _
    $region19: #{tpu_custom_call.1} parent=1 // pred_check_branch
      %28 = sbr.rel (0) target = $region21
    $region20: #{tpu_custom_call.1} parent=1 // pred_region
      _
    $region21: #{tpu_custom_call.1} parent=1 // pred_fallthru
      _
    // Predicated region
    $region22: #{tpu_custom_call.1} parent=1 // pred_check
      _
    $region23: #{tpu_custom_call.1} parent=1 // pred_check_branch
      %30 = sbr.rel (0) target = $region25
    $region24: #{tpu_custom_call.1} parent=1 // pred_region
      _
    $region25: #{tpu_custom_call.1} parent=1 // pred_fallthru
      _
    // Predicated region
    $region26: #{tpu_custom_call.1} parent=1 // pred_check
      _
    $region27: #{tpu_custom_call.1} parent=1 // pred_check_branch
      %32 = sbr.rel (0) target = $region29
    $region28: #{tpu_custom_call.1} parent=1 // pred_region
      _
    $region29: #{tpu_custom_call.1} parent=1 // pred_fallthru
      _
    // Predicated region
    $region30: #{tpu_custom_call.1} parent=1 // pred_check
      _
    $region31: #{tpu_custom_call.1} parent=1 // pred_check_branch
      %34 = sbr.rel (0) target = $region33
    $region32: #{tpu_custom_call.1} parent=1 // pred_region
      _
    $region33: #{tpu_custom_call.1} parent=1 // pred_fallthru
      _
    // Predicated region
    $region34: #{tpu_custom_call.1} parent=1 // pred_check
      _
    $region35: #{tpu_custom_call.1} parent=1 // pred_check_branch
      %36 = sbr.rel (0) target = $region37
    $region36: #{tpu_custom_call.1} parent=1 // pred_region
      _
    $region37: #{tpu_custom_call.1} parent=1 // pred_fallthru
      _
    // Predicated region
    $region38: #{tpu_custom_call.1} parent=1 // pred_check
      _
    $region39: #{tpu_custom_call.1} parent=1 // pred_check_branch
      %38 = sbr.rel (0) target = $region41
    $region40: #{tpu_custom_call.1} parent=1 // pred_region
      _
    $region41: #{tpu_custom_call.1} parent=1 // pred_fallthru
      _
    // Predicated region
    $region42: #{tpu_custom_call.1} parent=1 // pred_check
      _
    $region43: #{tpu_custom_call.1} parent=1 // pred_check_branch
      %40 = sbr.rel (0) target = $region45
    $region44: #{tpu_custom_call.1} parent=1 // pred_region
      _
    $region45: #{tpu_custom_call.1} parent=1 // pred_fallthru
      _
    // Predicated region
    $region46: #{tpu_custom_call.1} parent=1 // pred_check
      _
    $region47: #{tpu_custom_call.1} parent=1 // pred_check_branch
      %42 = sbr.rel (0) target = $region49
    $region48: #{tpu_custom_call.1} parent=1 // pred_region
      _
    $region49: #{tpu_custom_call.1} parent=1 // pred_fallthru
      _
    // Predicated region
    $region50: #{tpu_custom_call.1} parent=1 // pred_check
      _
    $region51: #{tpu_custom_call.1} parent=1 // pred_check_branch
      %44 = sbr.rel (0) target = $region53
    $region52: #{tpu_custom_call.1} parent=1 // pred_region
      _
    $region53: #{tpu_custom_call.1} parent=1 // pred_fallthru
      _
    %v45 = vld [vmem:[%s2] sm:$0x3]
    %v46 = vld [vmem:[%s0] sm:$0xff]
    %v47 = vld [vmem:[%s0 + $0x8] sm:$0xff]
    %v48 = vld [vmem:[%s3] sm:$0x3]
    %v49 = vld [vmem:[%s5] sm:$0xff]
    %v50 = vld [vmem:[%s5 + $0x8] sm:$0xff]
    %v51 = vld [vmem:[%s5 + $0x10] sm:$0xff]
    %v52 = vld [vmem:[%s5 + $0x18] sm:$0xff]
    %vm53 = vcmask 261120
    %v55 = vsel %vm53, %v45, 0
    %57 = vmatprep.subr.mxu0 0.0
    %58 = vmatpush1.msra.mxu0 %v49
    %59 = vmatprep.subr.mxu0 0.0
    %60 = vmatpush1.msra.mxu0 %v50
    %61 = vmatprep.subr.mxu0 0.0
    %62 = vmatpush1.msra.mxu0 %v51
    %63 = vmatprep.subr.mxu0 0.0
    %64 = vmatpush1.msra.mxu0 %v52
    %65 = vmatprep.subr.mxu0 0.0
    %66 = vmatpush1.msra.mxu0 0.0
    %67 = vmatprep.subr.mxu0 0.0
    %68 = vmatpush1.msra.mxu0 0.0
    %69 = vmatprep.subr.mxu0 0.0
    %70 = vmatpush1.msra.mxu0 0.0
    %71 = vmatprep.subr.mxu0 0.0
    %72 = vmatpush1.msra.mxu0 0.0
    %73 = vmatprep.subr.mxu0 0.0
    %74 = vmatpush1.msra.mxu0 0.0
    %75 = vmatprep.subr.mxu0 0.0
    %76 = vmatpush1.msra.mxu0 0.0
    %77 = vmatprep.subr.mxu0 0.0
    %78 = vmatpush1.msra.mxu0 0.0
    %79 = vmatprep.subr.mxu0 0.0
    %80 = vmatpush1.msra.mxu0 0.0
    %81 = vmatprep.subr.mxu0 0.0
    %82 = vmatpush1.msra.mxu0 0.0
    %83 = vmatprep.subr.mxu0 0.0
    %84 = vmatpush1.msra.mxu0 0.0
    %85 = vmatprep.subr.mxu0 0.0
    %86 = vmatpush1.msra.mxu0 0.0
    %87 = vmatprep.subr.mxu0 0.0
    %88 = vmatpush1.msra.mxu0 0.0
    %89 = vmatprep.subr.mxu0 0.0
    %90 = vmatpush1.msra.mxu0 0.0
    %91 = vmatprep.subr.mxu0 0.0
    %92 = vmatpush1.msra.mxu0 0.0
    %93 = vmatprep.subr.mxu0 0.0
    %94 = vmatpush1.msra.mxu0 0.0
    %95 = vmatprep.subr.mxu0 0.0
    %96 = vmatpush1.msra.mxu0 0.0
    %97 = vmatprep.subr.mxu0 0.0
    %98 = vmatpush1.msra.mxu0 0.0
    %99 = vmatprep.subr.mxu0 0.0
    %100 = vmatpush1.msra.mxu0 0.0
    %101 = vmatprep.subr.mxu0 0.0
    %102 = vmatpush1.msra.mxu0 0.0
    %103 = vmatprep.subr.mxu0 0.0
    %104 = vmatpush1.msra.mxu0 0.0
    %105 = vmatprep.subr.mxu0 0.0
    %106 = vmatpush1.msra.mxu0 0.0
    %107 = vmatprep.subr.mxu0 0.0
    %108 = vmatpush1.msra.mxu0 0.0
    %109 = vmatprep.subr.mxu0 0.0
    %110 = vmatpush1.msra.mxu0 0.0
    %111 = vmatprep.subr.mxu0 0.0
    %112 = vmatpush1.msra.mxu0 0.0
    %113 = vmatprep.subr.mxu0 0.0
    %114 = vmatpush1.msra.mxu0 0.0
    %115 = vmatprep.subr.mxu0 0.0
    %116 = vmatpush1.msra.mxu0 0.0
    %117 = vmatprep.subr.mxu0 0.0
    %118 = vmatpush1.msra.mxu0 0.0
    %119 = vmatprep.subr.mxu0 0.0
    %120 = vmatpush1.msra.mxu0 0.0
    %121 = vmatprep.mubr.f32.mxu0 0.0
    %122 = vmatmul.mubr.f32.gmra.mrb[0].mxu0 %v55
    %v123 = vpop.f32.mrb[0].mxu0
    %v124 = vadd.f32 0.0, %v123
    %v125 = vpop.f32.mrb[0].mxu0
    %126 = vdwg.mxu0
    %v127 = vld [vmem:[%s6] sm:$0xff]
    %v128 = vld [vmem:[%s6 + $0x8] sm:$0xff]
    %v129 = vld [vmem:[%s6 + $0x10] sm:$0xff]
    %v130 = vld [vmem:[%s6 + $0x18] sm:$0xff]
    %131 = vmatprep.subr.mxu0 0.0
    %132 = vmatpush1.msra.mxu0 %v127
    %133 = vmatprep.subr.mxu0 0.0
    %134 = vmatpush1.msra.mxu0 %v128
    %135 = vmatprep.subr.mxu0 0.0
    %136 = vmatpush1.msra.mxu0 %v129
    %137 = vmatprep.subr.mxu0 0.0
    %138 = vmatpush1.msra.mxu0 %v130
    %139 = vmatprep.subr.mxu0 0.0
    %140 = vmatpush1.msra.mxu0 0.0
    %141 = vmatprep.subr.mxu0 0.0
    %142 = vmatpush1.msra.mxu0 0.0
    %143 = vmatprep.subr.mxu0 0.0
    %144 = vmatpush1.msra.mxu0 0.0
    %145 = vmatprep.subr.mxu0 0.0
    %146 = vmatpush1.msra.mxu0 0.0
    %147 = vmatprep.subr.mxu0 0.0
    %148 = vmatpush1.msra.mxu0 0.0
    %149 = vmatprep.subr.mxu0 0.0
    %150 = vmatpush1.msra.mxu0 0.0
    %151 = vmatprep.subr.mxu0 0.0
    %152 = vmatpush1.msra.mxu0 0.0
    %153 = vmatprep.subr.mxu0 0.0
    %154 = vmatpush1.msra.mxu0 0.0
    %155 = vmatprep.subr.mxu0 0.0
    %156 = vmatpush1.msra.mxu0 0.0
    %157 = vmatprep.subr.mxu0 0.0
    %158 = vmatpush1.msra.mxu0 0.0
    %159 = vmatprep.subr.mxu0 0.0
    %160 = vmatpush1.msra.mxu0 0.0
    %161 = vmatprep.subr.mxu0 0.0
    %162 = vmatpush1.msra.mxu0 0.0
    %163 = vmatprep.subr.mxu0 0.0
    %164 = vmatpush1.msra.mxu0 0.0
    %165 = vmatprep.subr.mxu0 0.0
    %166 = vmatpush1.msra.mxu0 0.0
    %167 = vmatprep.subr.mxu0 0.0
    %168 = vmatpush1.msra.mxu0 0.0
    %169 = vmatprep.subr.mxu0 0.0
    %170 = vmatpush1.msra.mxu0 0.0
    %171 = vmatprep.subr.mxu0 0.0
    %172 = vmatpush1.msra.mxu0 0.0
    %173 = vmatprep.subr.mxu0 0.0
    %174 = vmatpush1.msra.mxu0 0.0
    %175 = vmatprep.subr.mxu0 0.0
    %176 = vmatpush1.msra.mxu0 0.0
    %177 = vmatprep.subr.mxu0 0.0
    %178 = vmatpush1.msra.mxu0 0.0
    %179 = vmatprep.subr.mxu0 0.0
    %180 = vmatpush1.msra.mxu0 0.0
    %181 = vmatprep.subr.mxu0 0.0
    %182 = vmatpush1.msra.mxu0 0.0
    %183 = vmatprep.subr.mxu0 0.0
    %184 = vmatpush1.msra.mxu0 0.0
    %185 = vmatprep.subr.mxu0 0.0
    %186 = vmatpush1.msra.mxu0 0.0
    %187 = vmatprep.subr.mxu0 0.0
    %188 = vmatpush1.msra.mxu0 0.0
    %189 = vmatprep.subr.mxu0 0.0
    %190 = vmatpush1.msra.mxu0 0.0
    %191 = vmatprep.subr.mxu0 0.0
    %192 = vmatpush1.msra.mxu0 0.0
    %193 = vmatprep.subr.mxu0 0.0
    %194 = vmatpush1.msra.mxu0 0.0
    %195 = vmatprep.mubr.f32.mxu0 0.0
    %196 = vmatmul.mubr.f32.gmra.mrb[0].mxu0 %v55
    %v197 = vpop.f32.mrb[0].mxu0
    %v198 = vadd.f32 0.0, %v197
    %v199 = vpop.f32.mrb[0].mxu0
    %200 = vdwg.mxu0
    %v201 = vlaneseq
    %v202 = vshrl.u32 %v201, 7
    %v204 = vunpack.c.l.s4 1966171168
    %v205 = vunpack.c.0.s8 %v204
    %v206 = vlaneseq
    %v207 = vshrl.u32 %v206, 7
    %v208 = vsub.s32 %v205, %v207
    %v209 = vrot.slane %v48, %v208
    %v210 = vcombine.high %v209, %v209
    %v212 = vunpack.c.l.s4 1966171168
    %v213 = vunpack.c.0.s8 %v212
    %v214 = vlaneseq
    %v215 = vshrl.u32 %v214, 7
    %v216 = vsub.s32 %v213, %v215
    %v217 = vrot.slane %v209, %v216
    %v219 = vunpack.c.l.s4 1966171168
    %v220 = vunpack.c.0.s8 %v219
    %v221 = vlaneseq
    %v222 = vshrl.u32 %v221, 7
    %v223 = vsub.s32 %v220, %v222
    %v224 = vrot.slane %v210, %v223
    %v225 = vlaneseq
    %v226 = vshrl.u32 %v225, 7
    %v227 = vsub.s32 0, %v226
    %v228 = vrot.slane %v217, %v227
    %v229 = vlaneseq
    %v230 = vshrl.u32 %v229, 7
    %v231 = vsub.s32 0, %v230
    %v232 = vrot.slane %v224, %v231
    %vm233 = vcmp.lt.s32.totalorder %v202, %v228
    %vm234 = vcmp.lt.s32.totalorder %v202, %v232
    %v237 = vunpack.c.l.s4 1966171168
    %v238 = vunpack.c.0.s8 %v237
    %v239 = vlaneseq
    %v240 = vshrl.u32 %v239, 7
    %v241 = vsub.s32 %v238, %v240
    %v242 = vrot.slane %v124, %v241
    %v243 = vcombine.high %v242, %v242
    %v245 = vunpack.c.l.s4 1966171168
    %v246 = vunpack.c.0.s8 %v245
    %v247 = vlaneseq
    %v248 = vshrl.u32 %v247, 7
    %v249 = vsub.s32 %v246, %v248
    %v250 = vrot.slane %v242, %v249
    %v252 = vunpack.c.l.s4 1966171168
    %v253 = vunpack.c.0.s8 %v252
    %v254 = vlaneseq
    %v255 = vshrl.u32 %v254, 7
    %v256 = vsub.s32 %v253, %v255
    %v257 = vrot.slane %v243, %v256
    %v258 = vlaneseq
    %v259 = vshrl.u32 %v258, 7
    %v260 = vsub.s32 0, %v259
    %v261 = vrot.slane %v250, %v260
    %v262 = vlaneseq
    %v263 = vshrl.u32 %v262, 7
    %v264 = vsub.s32 0, %v263
    %v265 = vrot.slane %v257, %v264
    %v268 = vmul.f32 %v46, %v261
    %v269 = vmul.f32 %v47, %v265
    %v270 = vsel %vm53, %v268, 0.0
    %271 = vadd.xlane.f32.xlu0 %v270
    %v272 = vpop.xlane.xlu0 %271
    %v273 = vsel %vm53, %v269, 0.0
    %274 = vadd.xlane.f32.xlu0 %v273
    %v275 = vpop.xlane.xlu0 %274
    %v278 = vunpack.c.l.s4 1966171168
    %v279 = vunpack.c.0.s8 %v278
    %v280 = vlaneseq
    %v281 = vshrl.u32 %v280, 7
    %v282 = vsub.s32 %v279, %v281
    %v283 = vrot.slane %v198, %v282
    %v284 = vcombine.high %v283, %v283
    %v286 = vunpack.c.l.s4 1966171168
    %v287 = vunpack.c.0.s8 %v286
    %v288 = vlaneseq
    %v289 = vshrl.u32 %v288, 7
    %v290 = vsub.s32 %v287, %v289
    %v291 = vrot.slane %v283, %v290
    %v293 = vunpack.c.l.s4 1966171168
    %v294 = vunpack.c.0.s8 %v293
    %v295 = vlaneseq
    %v296 = vshrl.u32 %v295, 7
    %v297 = vsub.s32 %v294, %v296
    %v298 = vrot.slane %v284, %v297
    %v299 = vlaneseq
    %v300 = vshrl.u32 %v299, 7
    %v301 = vsub.s32 0, %v300
    %v302 = vrot.slane %v291, %v301
    %v303 = vlaneseq
    %v304 = vshrl.u32 %v303, 7
    %v305 = vsub.s32 0, %v304
    %v306 = vrot.slane %v298, %v305
    %v309 = vadd.f32 %v272, %v302
    %v310 = vadd.f32 %v275, %v306
    %v311 = vsel %vm233, %v309, -100.0
    %v312 = vsel %vm234, %v310, -100.0
    %vm313 = vcmask 7168
    %v314 = vsel %vm313, %v311, -inf
    %v315 = vrot.slane %v314, 4
    %v316 = vmax.f32 %v314, %v315
    %v317 = vrot.slane %v316, 2
    %v318 = vmax.f32 %v316, %v317
    %v319 = vrot.slane %v318, 1
    %v320 = vmax.f32 %v318, %v319
    %v321 = vsel %vm313, %v312, -inf
    %v322 = vrot.slane %v321, 4
    %v323 = vmax.f32 %v321, %v322
    %v324 = vrot.slane %v323, 2
    %v325 = vmax.f32 %v323, %v324
    %v326 = vrot.slane %v325, 1
    %v327 = vmax.f32 %v325, %v326
    %v328 = vsub.f32 %v311, %v320
    %v329 = vsub.f32 %v312, %v327
    %v330 = vmul.f32 %v328, 1.442695
    %v331 = vpow.pop %v330
    %v332 = vmul.f32 %v329, 1.442695
    %v333 = vpow.pop %v332
    %v334 = vsel %vm313, %v331, 0.0
    %v335 = vrot.slane %v334, 4
    %v336 = vadd.f32 %v334, %v335
    %v337 = vrot.slane %v336, 2
    %v338 = vadd.f32 %v336, %v337
    %v339 = vrot.slane %v338, 1
    %v340 = vadd.f32 %v338, %v339
    %v341 = vsel %vm313, %v333, 0.0
    %v342 = vrot.slane %v341, 4
    %v343 = vadd.f32 %v341, %v342
    %v344 = vrot.slane %v343, 2
    %v345 = vadd.f32 %v343, %v344
    %v346 = vrot.slane %v345, 1
    %v347 = vadd.f32 %v345, %v346
    %v348 = vrcp.pop %v340
    %v349 = vrcp.pop %v347
    %v350 = vmul.f32 %v331, %v348
    %v351 = vmul.f32 %v333, %v349
    %353 = vset.pattern.permute.xlu0 0
    %354 = vperm.xlu0 %353, %v350
    %v355 = vpop.permute.xlu0 %354
    %358 = vset.pattern.permute.xlu0 0
    %359 = vperm.xlu0 %358, %v351
    %v360 = vpop.permute.xlu0 %359
    %v362 = vmul.f32 %v355, %v46
    %v363 = vmul.f32 %v360, %v47
    %v364 = vsel %vm53, %v362, 0.0
    %v365 = vrot.slane %v364, 4
    %v366 = vadd.f32 %v364, %v365
    %v367 = vrot.slane %v366, 2
    %v368 = vadd.f32 %v366, %v367
    %v369 = vrot.slane %v368, 1
    %v370 = vadd.f32 %v368, %v369
    %v371 = vsel %vm53, %v363, 0.0
    %v372 = vrot.slane %v371, 4
    %v373 = vadd.f32 %v371, %v372
    %v374 = vrot.slane %v373, 2
    %v375 = vadd.f32 %v373, %v374
    %v376 = vrot.slane %v375, 1
    %v377 = vadd.f32 %v375, %v376
    %378 = vrot.lane.b32.xlu0 %v261, 96
    %v379 = vpop.permute.xlu0 %378
    %380 = vrot.lane.b32.xlu0 %v265, 96
    %v381 = vpop.permute.xlu0 %380
    %v384 = vmul.f32 %v46, %v379
    %v385 = vmul.f32 %v47, %v381
    %v386 = vsel %vm53, %v384, 0.0
    %387 = vadd.xlane.f32.xlu0 %v386
    %v388 = vpop.xlane.xlu0 %387
    %v389 = vsel %vm53, %v385, 0.0
    %390 = vadd.xlane.f32.xlu0 %v389
    %v391 = vpop.xlane.xlu0 %390
    %v392 = vadd.f32 %v388, %v302
    %v393 = vadd.f32 %v391, %v306
    %396 = vrot.lane.b32.xlu0 %v392, 127
    %v397 = vpop.permute.xlu0 %396
    %398 = vrot.lane.b32.xlu0 %v393, 127
    %v399 = vpop.permute.xlu0 %398
    %v402 = vsel %vm233, %v397, -100.0
    %v403 = vsel %vm234, %v399, -100.0
    %v404 = vsel %vm313, %v402, -inf
    %v405 = vrot.slane %v404, 4
    %v406 = vmax.f32 %v404, %v405
    %v407 = vrot.slane %v406, 2
    %v408 = vmax.f32 %v406, %v407
    %v409 = vrot.slane %v408, 1
    %v410 = vmax.f32 %v408, %v409
    %v411 = vsel %vm313, %v403, -inf
    %v412 = vrot.slane %v411, 4
    %v413 = vmax.f32 %v411, %v412
    %v414 = vrot.slane %v413, 2
    %v415 = vmax.f32 %v413, %v414
    %v416 = vrot.slane %v415, 1
    %v417 = vmax.f32 %v415, %v416
    %v418 = vsub.f32 %v402, %v410
    %v419 = vsub.f32 %v403, %v417
    %v420 = vmul.f32 %v418, 1.442695
    %v421 = vpow.pop %v420
    %v422 = vmul.f32 %v419, 1.442695
    %v423 = vpow.pop %v422
    %v424 = vsel %vm313, %v421, 0.0
    %v425 = vrot.slane %v424, 4
    %v426 = vadd.f32 %v424, %v425
    %v427 = vrot.slane %v426, 2
    %v428 = vadd.f32 %v426, %v427
    %v429 = vrot.slane %v428, 1
    %v430 = vadd.f32 %v428, %v429
    %v431 = vsel %vm313, %v423, 0.0
    %v432 = vrot.slane %v431, 4
    %v433 = vadd.f32 %v431, %v432
    %v434 = vrot.slane %v433, 2
    %v435 = vadd.f32 %v433, %v434
    %v436 = vrot.slane %v435, 1
    %v437 = vadd.f32 %v435, %v436
    %v438 = vrcp.pop %v430
    %v439 = vrcp.pop %v437
    %v440 = vmul.f32 %v421, %v438
    %v441 = vmul.f32 %v423, %v439
    %443 = vset.pattern.permute.xlu0 0
    %444 = vperm.xlu0 %443, %v440
    %v445 = vpop.permute.xlu0 %444
    %448 = vset.pattern.permute.xlu0 0
    %449 = vperm.xlu0 %448, %v441
    %v450 = vpop.permute.xlu0 %449
    %v452 = vmul.f32 %v445, %v46
    %v453 = vmul.f32 %v450, %v47
    %v454 = vsel %vm53, %v452, 0.0
    %v455 = vrot.slane %v454, 4
    %v456 = vadd.f32 %v454, %v455
    %v457 = vrot.slane %v456, 2
    %v458 = vadd.f32 %v456, %v457
    %v459 = vrot.slane %v458, 1
    %v460 = vadd.f32 %v458, %v459
    %v461 = vsel %vm53, %v453, 0.0
    %v462 = vrot.slane %v461, 4
    %v463 = vadd.f32 %v461, %v462
    %v464 = vrot.slane %v463, 2
    %v465 = vadd.f32 %v463, %v464
    %v466 = vrot.slane %v465, 1
    %v467 = vadd.f32 %v465, %v466
    %v468 = vld [vmem:[%s1] sm:$0x1f]
    %v469 = vld [vmem:[%s1 + $0x8] sm:$0x1f]
    %v470 = vld [vmem:[%s4] sm:$0x3]
    %v471 = vld [vmem:[%s7] sm:$0xff]
    %v472 = vld [vmem:[%s7 + $0x8] sm:$0xff]
    %v473 = vld [vmem:[%s7 + $0x10] sm:$0xff]
    %v474 = vld [vmem:[%s7 + $0x18] sm:$0xff]
    %475 = vmatprep.subr.mxu0 0.0
    %476 = vmatpush1.msra.mxu0 %v471
    %477 = vmatprep.subr.mxu0 0.0
    %478 = vmatpush1.msra.mxu0 %v472
    %479 = vmatprep.subr.mxu0 0.0
    %480 = vmatpush1.msra.mxu0 %v473
    %481 = vmatprep.subr.mxu0 0.0
    %482 = vmatpush1.msra.mxu0 %v474
    %483 = vmatprep.subr.mxu0 0.0
    %484 = vmatpush1.msra.mxu0 0.0
    %485 = vmatprep.subr.mxu0 0.0
    %486 = vmatpush1.msra.mxu0 0.0
    %487 = vmatprep.subr.mxu0 0.0
    %488 = vmatpush1.msra.mxu0 0.0
    %489 = vmatprep.subr.mxu0 0.0
    %490 = vmatpush1.msra.mxu0 0.0
    %491 = vmatprep.subr.mxu0 0.0
    %492 = vmatpush1.msra.mxu0 0.0
    %493 = vmatprep.subr.mxu0 0.0
    %494 = vmatpush1.msra.mxu0 0.0
    %495 = vmatprep.subr.mxu0 0.0
    %496 = vmatpush1.msra.mxu0 0.0
    %497 = vmatprep.subr.mxu0 0.0
    %498 = vmatpush1.msra.mxu0 0.0
    %499 = vmatprep.subr.mxu0 0.0
    %500 = vmatpush1.msra.mxu0 0.0
    %501 = vmatprep.subr.mxu0 0.0
    %502 = vmatpush1.msra.mxu0 0.0
    %503 = vmatprep.subr.mxu0 0.0
    %504 = vmatpush1.msra.mxu0 0.0
    %505 = vmatprep.subr.mxu0 0.0
    %506 = vmatpush1.msra.mxu0 0.0
    %507 = vmatprep.subr.mxu0 0.0
    %508 = vmatpush1.msra.mxu0 0.0
    %509 = vmatprep.subr.mxu0 0.0
    %510 = vmatpush1.msra.mxu0 0.0
    %511 = vmatprep.subr.mxu0 0.0
    %512 = vmatpush1.msra.mxu0 0.0
    %513 = vmatprep.subr.mxu0 0.0
    %514 = vmatpush1.msra.mxu0 0.0
    %515 = vmatprep.subr.mxu0 0.0
    %516 = vmatpush1.msra.mxu0 0.0
    %517 = vmatprep.subr.mxu0 0.0
    %518 = vmatpush1.msra.mxu0 0.0
    %519 = vmatprep.subr.mxu0 0.0
    %520 = vmatpush1.msra.mxu0 0.0
    %521 = vmatprep.subr.mxu0 0.0
    %522 = vmatpush1.msra.mxu0 0.0
    %523 = vmatprep.subr.mxu0 0.0
    %524 = vmatpush1.msra.mxu0 0.0
    %525 = vmatprep.subr.mxu0 0.0
    %526 = vmatpush1.msra.mxu0 0.0
    %527 = vmatprep.subr.mxu0 0.0
    %528 = vmatpush1.msra.mxu0 0.0
    %529 = vmatprep.subr.mxu0 0.0
    %530 = vmatpush1.msra.mxu0 0.0
    %531 = vmatprep.subr.mxu0 0.0
    %532 = vmatpush1.msra.mxu0 0.0
    %533 = vmatprep.subr.mxu0 0.0
    %534 = vmatpush1.msra.mxu0 0.0
    %535 = vmatprep.subr.mxu0 0.0
    %536 = vmatpush1.msra.mxu0 0.0
    %537 = vmatprep.subr.mxu0 0.0
    %538 = vmatpush1.msra.mxu0 0.0
    %539 = vmatprep.mubr.f32.mxu0 0.0
    %540 = vmatmul.mubr.f32.gmra.mrb[0].mxu0 %v55
    %v541 = vpop.f32.mrb[0].mxu0
    %v542 = vadd.f32 0.0, %v541
    %v543 = vpop.f32.mrb[0].mxu0
    %544 = vdwg.mxu0
    %v545 = vld [vmem:[%s8] sm:$0xff]
    %v546 = vld [vmem:[%s8 + $0x8] sm:$0xff]
    %v547 = vld [vmem:[%s8 + $0x10] sm:$0xff]
    %v548 = vld [vmem:[%s8 + $0x18] sm:$0xff]
    %549 = vmatprep.subr.mxu0 0.0
    %550 = vmatpush1.msra.mxu0 %v545
    %551 = vmatprep.subr.mxu0 0.0
    %552 = vmatpush1.msra.mxu0 %v546
    %553 = vmatprep.subr.mxu0 0.0
    %554 = vmatpush1.msra.mxu0 %v547
    %555 = vmatprep.subr.mxu0 0.0
    %556 = vmatpush1.msra.mxu0 %v548
    %557 = vmatprep.subr.mxu0 0.0
    %558 = vmatpush1.msra.mxu0 0.0
    %559 = vmatprep.subr.mxu0 0.0
    %560 = vmatpush1.msra.mxu0 0.0
    %561 = vmatprep.subr.mxu0 0.0
    %562 = vmatpush1.msra.mxu0 0.0
    %563 = vmatprep.subr.mxu0 0.0
    %564 = vmatpush1.msra.mxu0 0.0
    %565 = vmatprep.subr.mxu0 0.0
    %566 = vmatpush1.msra.mxu0 0.0
    %567 = vmatprep.subr.mxu0 0.0
    %568 = vmatpush1.msra.mxu0 0.0
    %569 = vmatprep.subr.mxu0 0.0
    %570 = vmatpush1.msra.mxu0 0.0
    %571 = vmatprep.subr.mxu0 0.0
    %572 = vmatpush1.msra.mxu0 0.0
    %573 = vmatprep.subr.mxu0 0.0
    %574 = vmatpush1.msra.mxu0 0.0
    %575 = vmatprep.subr.mxu0 0.0
    %576 = vmatpush1.msra.mxu0 0.0
    %577 = vmatprep.subr.mxu0 0.0
    %578 = vmatpush1.msra.mxu0 0.0
    %579 = vmatprep.subr.mxu0 0.0
    %580 = vmatpush1.msra.mxu0 0.0
    %581 = vmatprep.subr.mxu0 0.0
    %582 = vmatpush1.msra.mxu0 0.0
    %583 = vmatprep.subr.mxu0 0.0
    %584 = vmatpush1.msra.mxu0 0.0
    %585 = vmatprep.subr.mxu0 0.0
    %586 = vmatpush1.msra.mxu0 0.0
    %587 = vmatprep.subr.mxu0 0.0
    %588 = vmatpush1.msra.mxu0 0.0
    %589 = vmatprep.subr.mxu0 0.0
    %590 = vmatpush1.msra.mxu0 0.0
    %591 = vmatprep.subr.mxu0 0.0
    %592 = vmatpush1.msra.mxu0 0.0
    %593 = vmatprep.subr.mxu0 0.0
    %594 = vmatpush1.msra.mxu0 0.0
    %595 = vmatprep.subr.mxu0 0.0
    %596 = vmatpush1.msra.mxu0 0.0
    %597 = vmatprep.subr.mxu0 0.0
    %598 = vmatpush1.msra.mxu0 0.0
    %599 = vmatprep.subr.mxu0 0.0
    %600 = vmatpush1.msra.mxu0 0.0
    %601 = vmatprep.subr.mxu0 0.0
    %602 = vmatpush1.msra.mxu0 0.0
    %603 = vmatprep.subr.mxu0 0.0
    %604 = vmatpush1.msra.mxu0 0.0
    %605 = vmatprep.subr.mxu0 0.0
    %606 = vmatpush1.msra.mxu0 0.0
    %607 = vmatprep.subr.mxu0 0.0
    %608 = vmatpush1.msra.mxu0 0.0
    %609 = vmatprep.subr.mxu0 0.0
    %610 = vmatpush1.msra.mxu0 0.0
    %611 = vmatprep.subr.mxu0 0.0
    %612 = vmatpush1.msra.mxu0 0.0
    %613 = vmatprep.mubr.f32.mxu0 0.0
    %614 = vmatmul.mubr.f32.gmra.mrb[0].mxu0 %v55
    %v615 = vpop.f32.mrb[0].mxu0
    %v616 = vadd.f32 0.0, %v615
    %v617 = vpop.f32.mrb[0].mxu0
    %618 = vdwg.mxu0
    %v620 = vunpack.c.l.s4 1966171168
    %v621 = vunpack.c.0.s8 %v620
    %v622 = vlaneseq
    %v623 = vshrl.u32 %v622, 7
    %v624 = vsub.s32 %v621, %v623
    %v625 = vrot.slane %v470, %v624
    %v626 = vcombine.high %v625, %v625
    %v628 = vunpack.c.l.s4 1966171168
    %v629 = vunpack.c.0.s8 %v628
    %v630 = vlaneseq
    %v631 = vshrl.u32 %v630, 7
    %v632 = vsub.s32 %v629, %v631
    %v633 = vrot.slane %v625, %v632
    %v635 = vunpack.c.l.s4 1966171168
    %v636 = vunpack.c.0.s8 %v635
    %v637 = vlaneseq
    %v638 = vshrl.u32 %v637, 7
    %v639 = vsub.s32 %v636, %v638
    %v640 = vrot.slane %v626, %v639
    %v641 = vlaneseq
    %v642 = vshrl.u32 %v641, 7
    %v643 = vsub.s32 0, %v642
    %v644 = vrot.slane %v633, %v643
    %v645 = vlaneseq
    %v646 = vshrl.u32 %v645, 7
    %v647 = vsub.s32 0, %v646
    %v648 = vrot.slane %v640, %v647
    %vm649 = vcmp.lt.s32.totalorder %v202, %v644
    %vm650 = vcmp.lt.s32.totalorder %v202, %v648
    %v653 = vunpack.c.l.s4 1966171168
    %v654 = vunpack.c.0.s8 %v653
    %v655 = vlaneseq
    %v656 = vshrl.u32 %v655, 7
    %v657 = vsub.s32 %v654, %v656
    %v658 = vrot.slane %v542, %v657
    %v659 = vcombine.high %v658, %v658
    %v661 = vunpack.c.l.s4 1966171168
    %v662 = vunpack.c.0.s8 %v661
    %v663 = vlaneseq
    %v664 = vshrl.u32 %v663, 7
    %v665 = vsub.s32 %v662, %v664
    %v666 = vrot.slane %v658, %v665
    %v668 = vunpack.c.l.s4 1966171168
    %v669 = vunpack.c.0.s8 %v668
    %v670 = vlaneseq
    %v671 = vshrl.u32 %v670, 7
    %v672 = vsub.s32 %v669, %v671
    %v673 = vrot.slane %v659, %v672
    %v674 = vlaneseq
    %v675 = vshrl.u32 %v674, 7
    %v676 = vsub.s32 0, %v675
    %v677 = vrot.slane %v666, %v676
    %v678 = vlaneseq
    %v679 = vshrl.u32 %v678, 7
    %v680 = vsub.s32 0, %v679
    %v681 = vrot.slane %v673, %v680
    %v684 = vmul.f32 %v468, %v677
    %v685 = vmul.f32 %v469, %v681
    %vm686 = vcmask 258048
    %v687 = vsel %vm686, %v684, 0.0
    %688 = vadd.xlane.f32.xlu0 %v687
    %v689 = vpop.xlane.xlu0 %688
    %v690 = vsel %vm686, %v685, 0.0
    %691 = vadd.xlane.f32.xlu0 %v690
    %v692 = vpop.xlane.xlu0 %691
    %v695 = vunpack.c.l.s4 1966171168
    %v696 = vunpack.c.0.s8 %v695
    %v697 = vlaneseq
    %v698 = vshrl.u32 %v697, 7
    %v699 = vsub.s32 %v696, %v698
    %v700 = vrot.slane %v616, %v699
    %v701 = vcombine.high %v700, %v700
    %v703 = vunpack.c.l.s4 1966171168
    %v704 = vunpack.c.0.s8 %v703
    %v705 = vlaneseq
    %v706 = vshrl.u32 %v705, 7
    %v707 = vsub.s32 %v704, %v706
    %v708 = vrot.slane %v700, %v707
    %v710 = vunpack.c.l.s4 1966171168
    %v711 = vunpack.c.0.s8 %v710
    %v712 = vlaneseq
    %v713 = vshrl.u32 %v712, 7
    %v714 = vsub.s32 %v711, %v713
    %v715 = vrot.slane %v701, %v714
    %v716 = vlaneseq
    %v717 = vshrl.u32 %v716, 7
    %v718 = vsub.s32 0, %v717
    %v719 = vrot.slane %v708, %v718
    %v720 = vlaneseq
    %v721 = vshrl.u32 %v720, 7
    %v722 = vsub.s32 0, %v721
    %v723 = vrot.slane %v715, %v722
    %v726 = vadd.f32 %v689, %v719
    %v727 = vadd.f32 %v692, %v723
    %v728 = vsel %vm649, %v726, -100.0
    %v729 = vsel %vm650, %v727, -100.0
    %vm730 = vcmask 4096
    %v731 = vsel %vm730, %v728, -inf
    %v732 = vrot.slane %v731, 4
    %v733 = vmax.f32 %v731, %v732
    %v734 = vrot.slane %v733, 2
    %v735 = vmax.f32 %v733, %v734
    %v736 = vrot.slane %v735, 1
    %v737 = vmax.f32 %v735, %v736
    %v738 = vsel %vm730, %v729, -inf
    %v739 = vrot.slane %v738, 4
    %v740 = vmax.f32 %v738, %v739
    %v741 = vrot.slane %v740, 2
    %v742 = vmax.f32 %v740, %v741
    %v743 = vrot.slane %v742, 1
    %v744 = vmax.f32 %v742, %v743
    %v745 = vsub.f32 %v728, %v737
    %v746 = vsub.f32 %v729, %v744
    %v747 = vmul.f32 %v745, 1.442695
    %v748 = vpow.pop %v747
    %v749 = vmul.f32 %v746, 1.442695
    %v750 = vpow.pop %v749
    %v751 = vsel %vm730, %v748, 0.0
    %v752 = vrot.slane %v751, 4
    %v753 = vadd.f32 %v751, %v752
    %v754 = vrot.slane %v753, 2
    %v755 = vadd.f32 %v753, %v754
    %v756 = vrot.slane %v755, 1
    %v757 = vadd.f32 %v755, %v756
    %v758 = vsel %vm730, %v750, 0.0
    %v759 = vrot.slane %v758, 4
    %v760 = vadd.f32 %v758, %v759
    %v761 = vrot.slane %v760, 2
    %v762 = vadd.f32 %v760, %v761
    %v763 = vrot.slane %v762, 1
    %v764 = vadd.f32 %v762, %v763
    %v765 = vrcp.pop %v757
    %v766 = vrcp.pop %v764
    %v767 = vmul.f32 %v748, %v765
    %v768 = vmul.f32 %v750, %v766
    %770 = vset.pattern.permute.xlu0 0
    %771 = vperm.xlu0 %770, %v767
    %v772 = vpop.permute.xlu0 %771
    %775 = vset.pattern.permute.xlu0 0
    %776 = vperm.xlu0 %775, %v768
    %v777 = vpop.permute.xlu0 %776
    %v779 = vmul.f32 %v772, %v468
    %v780 = vmul.f32 %v777, %v469
    %v781 = vsel %vm686, %v779, 0.0
    %v782 = vrot.slane %v781, 4
    %v783 = vadd.f32 %v781, %v782
    %v784 = vrot.slane %v783, 2
    %v785 = vadd.f32 %v783, %v784
    %v786 = vrot.slane %v785, 1
    %v787 = vadd.f32 %v785, %v786
    %v788 = vsel %vm686, %v780, 0.0
    %v789 = vrot.slane %v788, 4
    %v790 = vadd.f32 %v788, %v789
    %v791 = vrot.slane %v790, 2
    %v792 = vadd.f32 %v790, %v791
    %v793 = vrot.slane %v792, 1
    %v794 = vadd.f32 %v792, %v793
    %795 = vrot.lane.b32.xlu0 %v677, 96
    %v796 = vpop.permute.xlu0 %795
    %797 = vrot.lane.b32.xlu0 %v681, 96
    %v798 = vpop.permute.xlu0 %797
    %v801 = vmul.f32 %v468, %v796
    %v802 = vmul.f32 %v469, %v798
    %v803 = vsel %vm686, %v801, 0.0
    %804 = vadd.xlane.f32.xlu0 %v803
    %v805 = vpop.xlane.xlu0 %804
    %v806 = vsel %vm686, %v802, 0.0
    %807 = vadd.xlane.f32.xlu0 %v806
    %v808 = vpop.xlane.xlu0 %807
    %v809 = vadd.f32 %v805, %v719
    %v810 = vadd.f32 %v808, %v723
    %813 = vrot.lane.b32.xlu0 %v809, 127
    %v814 = vpop.permute.xlu0 %813
    %815 = vrot.lane.b32.xlu0 %v810, 127
    %v816 = vpop.permute.xlu0 %815
    %v819 = vsel %vm649, %v814, -100.0
    %v820 = vsel %vm650, %v816, -100.0
    %v821 = vsel %vm730, %v819, -inf
    %v822 = vrot.slane %v821, 4
    %v823 = vmax.f32 %v821, %v822
    %v824 = vrot.slane %v823, 2
    %v825 = vmax.f32 %v823, %v824
    %v826 = vrot.slane %v825, 1
    %v827 = vmax.f32 %v825, %v826
    %v828 = vsel %vm730, %v820, -inf
    %v829 = vrot.slane %v828, 4
    %v830 = vmax.f32 %v828, %v829
    %v831 = vrot.slane %v830, 2
    %v832 = vmax.f32 %v830, %v831
    %v833 = vrot.slane %v832, 1
    %v834 = vmax.f32 %v832, %v833
    %v835 = vsub.f32 %v819, %v827
    %v836 = vsub.f32 %v820, %v834
    %v837 = vmul.f32 %v835, 1.442695
    %v838 = vpow.pop %v837
    %v839 = vmul.f32 %v836, 1.442695
    %v840 = vpow.pop %v839
    %v841 = vsel %vm730, %v838, 0.0
    %v842 = vrot.slane %v841, 4
    %v843 = vadd.f32 %v841, %v842
    %v844 = vrot.slane %v843, 2
    %v845 = vadd.f32 %v843, %v844
    %v846 = vrot.slane %v845, 1
    %v847 = vadd.f32 %v845, %v846
    %v848 = vsel %vm730, %v840, 0.0
    %v849 = vrot.slane %v848, 4
    %v850 = vadd.f32 %v848, %v849
    %v851 = vrot.slane %v850, 2
    %v852 = vadd.f32 %v850, %v851
    %v853 = vrot.slane %v852, 1
    %v854 = vadd.f32 %v852, %v853
    %v855 = vrcp.pop %v847
    %v856 = vrcp.pop %v854
    %v857 = vmul.f32 %v838, %v855
    %v858 = vmul.f32 %v840, %v856
    %860 = vset.pattern.permute.xlu0 0
    %861 = vperm.xlu0 %860, %v857
    %v862 = vpop.permute.xlu0 %861
    %865 = vset.pattern.permute.xlu0 0
    %866 = vperm.xlu0 %865, %v858
    %v867 = vpop.permute.xlu0 %866
    %v869 = vmul.f32 %v862, %v468
    %v870 = vmul.f32 %v867, %v469
    %v871 = vsel %vm686, %v869, 0.0
    %v872 = vrot.slane %v871, 4
    %v873 = vadd.f32 %v871, %v872
    %v874 = vrot.slane %v873, 2
    %v875 = vadd.f32 %v873, %v874
    %v876 = vrot.slane %v875, 1
    %v877 = vadd.f32 %v875, %v876
    %v878 = vsel %vm686, %v870, 0.0
    %v879 = vrot.slane %v878, 4
    %v880 = vadd.f32 %v878, %v879
    %v881 = vrot.slane %v880, 2
    %v882 = vadd.f32 %v880, %v881
    %v883 = vrot.slane %v882, 1
    %v884 = vadd.f32 %v882, %v883
    %vm887 = vcmask 1041409
    %v888 = vsel %vm887, %v377, %v370
    %v892 = vsel %vm887, %v794, %v787
    %893 = vrot.lane.b32.xlu0 %v892, 32
    %v894 = vpop.permute.xlu0 %893
    %v898 = vsel %vm887, %v467, %v460
    %899 = vrot.lane.b32.xlu0 %v898, 64
    %v900 = vpop.permute.xlu0 %899
    %v904 = vsel %vm887, %v884, %v877
    %905 = vrot.lane.b32.xlu0 %v904, 96
    %v906 = vpop.permute.xlu0 %905
    %v908 = vsel %vm53, %v888, %v894
    %vm909 = vcmask 523264
    %v910 = vsel %vm909, %v908, %v900
    %vm911 = vcmask 785408
    %v912 = vsel %vm911, %v910, %v906
    %v913 = vld [vmem:[%s9] sm:$0xff]
    %v914 = vld [vmem:[%s9 + $0x8] sm:$0xff]
    %v915 = vld [vmem:[%s9 + $0x10] sm:$0xff]
    %v916 = vld [vmem:[%s9 + $0x18] sm:$0xff]
    %v917 = vld [vmem:[%s9 + $0x20] sm:$0xff]
    %v918 = vld [vmem:[%s9 + $0x28] sm:$0xff]
    %v919 = vld [vmem:[%s9 + $0x30] sm:$0xff]
    %v920 = vld [vmem:[%s9 + $0x38] sm:$0xff]
    %v921 = vld [vmem:[%s9 + $0x40] sm:$0xff]
    %v922 = vld [vmem:[%s9 + $0x48] sm:$0xff]
    %v923 = vld [vmem:[%s9 + $0x50] sm:$0xff]
    %v924 = vld [vmem:[%s9 + $0x58] sm:$0xff]
    %v925 = vld [vmem:[%s9 + $0x60] sm:$0xff]
    %v926 = vld [vmem:[%s9 + $0x68] sm:$0xff]
    %v927 = vld [vmem:[%s9 + $0x70] sm:$0xff]
    %v928 = vld [vmem:[%s9 + $0x78] sm:$0xff]
    %v929 = vld [vmem:[%s9 + $0x80] sm:$0xff]
    %v930 = vld [vmem:[%s9 + $0x88] sm:$0xff]
    %v931 = vld [vmem:[%s9 + $0x90] sm:$0xff]
    %v932 = vld [vmem:[%s9 + $0x98] sm:$0xff]
    %v933 = vld [vmem:[%s10] sm:$0x1]
    %v935 = vlaneseq
    %v936 = vshrl.u32 %v935, 7
    %v937 = vsub.s32 0, %v936
    %v938 = vrot.slane %v933, %v937
    %940 = vmatprep.subr.mxu0 0.0
    %941 = vmatpush1.msra.mxu0 %v913
    %942 = vmatprep.subr.mxu0 0.0
    %943 = vmatpush1.msra.mxu0 %v914
    %944 = vmatprep.subr.mxu0 0.0
    %945 = vmatpush1.msra.mxu0 %v915
    %946 = vmatprep.subr.mxu0 0.0
    %947 = vmatpush1.msra.mxu0 %v916
    %948 = vmatprep.subr.mxu0 0.0
    %949 = vmatpush1.msra.mxu0 %v917
    %950 = vmatprep.subr.mxu0 0.0
    %951 = vmatpush1.msra.mxu0 %v918
    %952 = vmatprep.subr.mxu0 0.0
    %953 = vmatpush1.msra.mxu0 %v919
    %954 = vmatprep.subr.mxu0 0.0
    %955 = vmatpush1.msra.mxu0 %v920
    %956 = vmatprep.subr.mxu0 0.0
    %957 = vmatpush1.msra.mxu0 %v921
    %958 = vmatprep.subr.mxu0 0.0
    %959 = vmatpush1.msra.mxu0 %v922
    %960 = vmatprep.subr.mxu0 0.0
    %961 = vmatpush1.msra.mxu0 %v923
    %962 = vmatprep.subr.mxu0 0.0
    %963 = vmatpush1.msra.mxu0 %v924
    %964 = vmatprep.subr.mxu0 0.0
    %965 = vmatpush1.msra.mxu0 %v925
    %966 = vmatprep.subr.mxu0 0.0
    %967 = vmatpush1.msra.mxu0 %v926
    %968 = vmatprep.subr.mxu0 0.0
    %969 = vmatpush1.msra.mxu0 %v927
    %970 = vmatprep.subr.mxu0 0.0
    %971 = vmatpush1.msra.mxu0 %v928
    %972 = vmatprep.subr.mxu0 0.0
    %973 = vmatpush1.msra.mxu0 %v929
    %974 = vmatprep.subr.mxu0 0.0
    %975 = vmatpush1.msra.mxu0 %v930
    %976 = vmatprep.subr.mxu0 0.0
    %977 = vmatpush1.msra.mxu0 %v931
    %978 = vmatprep.subr.mxu0 0.0
    %979 = vmatpush1.msra.mxu0 %v932
    %980 = vmatprep.subr.mxu0 0.0
    %981 = vmatpush1.msra.mxu0 0.0
    %982 = vmatprep.subr.mxu0 0.0
    %983 = vmatpush1.msra.mxu0 0.0
    %984 = vmatprep.subr.mxu0 0.0
    %985 = vmatpush1.msra.mxu0 0.0
    %986 = vmatprep.subr.mxu0 0.0
    %987 = vmatpush1.msra.mxu0 0.0
    %988 = vmatprep.subr.mxu0 0.0
    %989 = vmatpush1.msra.mxu0 0.0
    %990 = vmatprep.subr.mxu0 0.0
    %991 = vmatpush1.msra.mxu0 0.0
    %992 = vmatprep.subr.mxu0 0.0
    %993 = vmatpush1.msra.mxu0 0.0
    %994 = vmatprep.subr.mxu0 0.0
    %995 = vmatpush1.msra.mxu0 0.0
    %996 = vmatprep.subr.mxu0 0.0
    %997 = vmatpush1.msra.mxu0 0.0
    %998 = vmatprep.subr.mxu0 0.0
    %999 = vmatpush1.msra.mxu0 0.0
    %1000 = vmatprep.subr.mxu0 0.0
    %1001 = vmatpush1.msra.mxu0 0.0
    %1002 = vmatprep.subr.mxu0 0.0
    %1003 = vmatpush1.msra.mxu0 0.0
    %1004 = vmatprep.mubr.f32.mxu0 %v55
    %1005 = vmatmul.mubr.f32.gmra.mrb[0].mxu0 %v912
    %v1006 = vpop.f32.mrb[0].mxu0
    %v1007 = vadd.f32 %v938, %v1006
    %v1008 = vpop.f32.mrb[0].mxu0
    %1009 = vdwg.mxu0
    %v1010 = vtanh.pop %v1007
    %v1011 = vld [vmem:[%s11] sm:$0xff]
    %v1012 = vld [vmem:[%s11 + $0x8] sm:$0xff]
    %v1013 = vld [vmem:[%s11 + $0x10] sm:$0xff]
    %v1014 = vld [vmem:[%s11 + $0x18] sm:$0xff]
    %v1015 = vld [vmem:[%s11 + $0x20] sm:$0xff]
    %v1016 = vld [vmem:[%s11 + $0x28] sm:$0xff]
    %v1017 = vld [vmem:[%s11 + $0x30] sm:$0xff]
    %v1018 = vld [vmem:[%s11 + $0x38] sm:$0xff]
    %v1019 = vld [vmem:[%s12] sm:$0x1]
    %v1021 = vlaneseq
    %v1022 = vshrl.u32 %v1021, 7
    %v1023 = vsub.s32 0, %v1022
    %v1024 = vrot.slane %v1019, %v1023
    %v1027 = vsel %vm909, %v1010, 0
    %1029 = vmatprep.subr.mxu0 0.0
    %1030 = vmatpush1.msra.mxu0 %v1011
    %1031 = vmatprep.subr.mxu0 0.0
    %1032 = vmatpush1.msra.mxu0 %v1012
    %1033 = vmatprep.subr.mxu0 0.0
    %1034 = vmatpush1.msra.mxu0 %v1013
    %1035 = vmatprep.subr.mxu0 0.0
    %1036 = vmatpush1.msra.mxu0 %v1014
    %1037 = vmatprep.subr.mxu0 0.0
    %1038 = vmatpush1.msra.mxu0 %v1015
    %1039 = vmatprep.subr.mxu0 0.0
    %1040 = vmatpush1.msra.mxu0 %v1016
    %1041 = vmatprep.subr.mxu0 0.0
    %1042 = vmatpush1.msra.mxu0 %v1017
    %1043 = vmatprep.subr.mxu0 0.0
    %1044 = vmatpush1.msra.mxu0 %v1018
    %1045 = vmatprep.subr.mxu0 0.0
    %1046 = vmatpush1.msra.mxu0 0.0
    %1047 = vmatprep.subr.mxu0 0.0
    %1048 = vmatpush1.msra.mxu0 0.0
    %1049 = vmatprep.subr.mxu0 0.0
    %1050 = vmatpush1.msra.mxu0 0.0
    %1051 = vmatprep.subr.mxu0 0.0
    %1052 = vmatpush1.msra.mxu0 0.0
    %1053 = vmatprep.subr.mxu0 0.0
    %1054 = vmatpush1.msra.mxu0 0.0
    %1055 = vmatprep.subr.mxu0 0.0
    %1056 = vmatpush1.msra.mxu0 0.0
    %1057 = vmatprep.subr.mxu0 0.0
    %1058 = vmatpush1.msra.mxu0 0.0
    %1059 = vmatprep.subr.mxu0 0.0
    %1060 = vmatpush1.msra.mxu0 0.0
    %1061 = vmatprep.subr.mxu0 0.0
    %1062 = vmatpush1.msra.mxu0 0.0
    %1063 = vmatprep.subr.mxu0 0.0
    %1064 = vmatpush1.msra.mxu0 0.0
    %1065 = vmatprep.subr.mxu0 0.0
    %1066 = vmatpush1.msra.mxu0 0.0
    %1067 = vmatprep.subr.mxu0 0.0
    %1068 = vmatpush1.msra.mxu0 0.0
    %1069 = vmatprep.subr.mxu0 0.0
    %1070 = vmatpush1.msra.mxu0 0.0
    %1071 = vmatprep.subr.mxu0 0.0
    %1072 = vmatpush1.msra.mxu0 0.0
    %1073 = vmatprep.subr.mxu0 0.0
    %1074 = vmatpush1.msra.mxu0 0.0
    %1075 = vmatprep.subr.mxu0 0.0
    %1076 = vmatpush1.msra.mxu0 0.0
    %1077 = vmatprep.subr.mxu0 0.0
    %1078 = vmatpush1.msra.mxu0 0.0
    %1079 = vmatprep.subr.mxu0 0.0
    %1080 = vmatpush1.msra.mxu0 0.0
    %1081 = vmatprep.subr.mxu0 0.0
    %1082 = vmatpush1.msra.mxu0 0.0
    %1083 = vmatprep.subr.mxu0 0.0
    %1084 = vmatpush1.msra.mxu0 0.0
    %1085 = vmatprep.subr.mxu0 0.0
    %1086 = vmatpush1.msra.mxu0 0.0
    %1087 = vmatprep.subr.mxu0 0.0
    %1088 = vmatpush1.msra.mxu0 0.0
    %1089 = vmatprep.subr.mxu0 0.0
    %1090 = vmatpush1.msra.mxu0 0.0
    %1091 = vmatprep.subr.mxu0 0.0
    %1092 = vmatpush1.msra.mxu0 0.0
    %1093 = vmatprep.mubr.f32.mxu0 0.0
    %1094 = vmatmul.mubr.f32.gmra.mrb[0].mxu0 %v1027
    %v1095 = vpop.f32.mrb[0].mxu0
    %v1096 = vadd.f32 %v1024, %v1095
    %v1097 = vpop.f32.mrb[0].mxu0
    %1098 = vdwg.mxu0
    %vm1099 = vcmask 99328
    %1100 = vst.msk [vmem:[#allocation2] sm:$0x3] %vm1099, %v1096
    // Predicated region
    $region54: #{tpu_custom_call.1} parent=1 // pred_check
      _
    $region55: #{tpu_custom_call.1} parent=1 // pred_check_branch
      %1102 = sbr.rel (0) target = $region57
    $region56: #{tpu_custom_call.1} parent=1 // pred_region
      %s1104 = ssub.s32 32, 32
      %1105 = vsyncadd [#allocation3], %s1104
      %s1107 = sshll.u32 [#allocation2], 4
      %s1108 = int_to_ptr.vmem [resolvable:$true] %s1107
      %1110 = dma.vmem_to_hbm [thread:$0]  %s1108, 32, %s13, [#allocation3]
    $region57: #{tpu_custom_call.1} parent=1 // pred_fallthru
      _
    // Predicated region
    $region58: #{tpu_custom_call.1} parent=1 // pred_check
      _
    $region59: #{tpu_custom_call.1} parent=1 // pred_check_branch
      %1112 = sbr.rel (0) target = $region61
    $region60: #{tpu_custom_call.1} parent=1 // pred_region
      %1113 = dma.done [#allocation3], 32
    $region61: #{tpu_custom_call.1} parent=1 // pred_fallthru
      _
    %1114 = vsyncpa [#allocation3], 1

</llo_original>
